<compile_context>
chip_gen: v6e
topology: v6e:2x2x1
jax: 0.10.0
libtpu: 0.0.40
codegen_flags: <defaults>
</compile_context>

<pallas_src>
import functools
import math

import jax
import jax.numpy as jnp
from jax import lax
from jax.experimental import pallas as pl
from jax.experimental.pallas import tpu as pltpu

LANE = 128
MAX_BLOCK_ROWS = 2048   # (2048, 128) f32 = 1 MiB per input tile
NSPLIT = 2              # leading "parallel" grid axis -> both TensorCores on v7x


def _gdice_kernel(x_ref, y_ref, out_ref, acc_x, acc_xy, acc_y,
                  *, apply_non_lin, total, block_rows):
    c = pl.program_id(0)
    s = pl.program_id(1)

    @pl.when(s == 0)
    def _():
        acc_x[...] = jnp.zeros_like(acc_x)
        acc_xy[...] = jnp.zeros_like(acc_xy)
        acc_y[...] = jnp.zeros_like(acc_y)

    def accumulate(mask):
        xv = x_ref[...].astype(jnp.float32)
        yv = y_ref[...].astype(jnp.float32)
        if apply_non_lin:
            xv = jax.nn.sigmoid(xv)
        if mask is not None:
            xv = jnp.where(mask, xv, 0.0)
            yv = jnp.where(mask, yv, 0.0)
        # Hot loop: pure elementwise VPU adds into VMEM vector accumulators
        # (no per-step XLU reduction, no SMEM scalar read-modify-write chain).
        acc_x[...] += xv
        acc_y[...] += yv
        acc_xy[...] += xv * yv

    # Unclamped row-block this (c, s) grid point is responsible for. The
    # index_map clamps the actual DMA to the last valid block; the mask below
    # (built from the UNclamped global element index) zeroes any duplicated /
    # out-of-range / padded lanes, so nothing is ever double counted.
    block_elems = block_rows * LANE
    row_block = c * pl.num_programs(1) + s
    block_end = (row_block + 1) * block_elems
    needs_mask = block_end > total

    @pl.when(jnp.logical_not(needs_mask))
    def _():
        accumulate(None)            # fast path: no masking work at all

    @pl.when(needs_mask)
    def _():
        base = row_block * block_elems
        row_ids = lax.broadcasted_iota(jnp.int32, (block_rows, LANE), 0)
        lane_ids = lax.broadcasted_iota(jnp.int32, (block_rows, LANE), 1)
        idx = base + row_ids * LANE + lane_ids
        accumulate(idx < total)

    # Epilogue: one cross-sublane (XLU) reduction per accumulator; the tiny
    # lane-sum and the Dice formula are finished (scalar cost) in the wrapper.
    @pl.when(s == pl.num_programs(1) - 1)
    def _():
        out_ref[0, 0, :] = jnp.sum(acc_x[...], axis=0)
        out_ref[0, 1, :] = jnp.sum(acc_xy[...], axis=0)
        out_ref[0, 2, :] = jnp.sum(acc_y[...], axis=0)


def generalized_dice(x, y, *, apply_non_lin=True, epsilon=1e-07):
    """Pallas implementation of GeneralizedDice.forward. Returns a scalar f32 loss."""
    assert x.shape == y.shape, "x and y must have the same shape"
    total = math.prod(x.shape)

    # Flatten (free, contiguous reshape) and present as a lane-dense (rows, 128)
    # slab. Inputs keep their native dtype (e.g. bf16) — the cast to f32 happens
    # in-kernel. Only a tiny (<128-element) tail pad is ever added; padded/OOB
    # elements are masked out inside the kernel so the fill value is irrelevant.
    xf = x.reshape(-1)
    yf = y.reshape(-1)
    rem = total % LANE
    if rem:
        xf = jnp.pad(xf, (0, LANE - rem))
        yf = jnp.pad(yf, (0, LANE - rem))
    rows = xf.shape[0] // LANE
    x2 = xf.reshape(rows, LANE)
    y2 = yf.reshape(rows, LANE)

    if rows <= 8:
        block_rows = rows                                  # full-extent block
    else:
        block_rows = min(MAX_BLOCK_ROWS, (rows // 8) * 8)  # multiple of 8
    num_row_blocks = pl.cdiv(rows, block_rows)
    nsplit = min(NSPLIT, num_row_blocks)
    steps = pl.cdiv(num_row_blocks, nsplit)

    def in_map(c, s):
        # Clamp so we never request a block start past the end of the array;
        # duplicated (clamped) blocks are fully masked inside the kernel.
        return (jnp.minimum(c * steps + s, num_row_blocks - 1), 0)

    kernel = functools.partial(
        _gdice_kernel,
        apply_non_lin=apply_non_lin,
        total=total,
        block_rows=block_rows,
    )

    partials = pl.pallas_call(
        kernel,
        out_shape=jax.ShapeDtypeStruct((nsplit, 3, LANE), jnp.float32),
        grid_spec=pltpu.PrefetchScalarGridSpec(
            num_scalar_prefetch=0,
            grid=(nsplit, steps),
            in_specs=[
                pl.BlockSpec((block_rows, LANE), in_map),
                pl.BlockSpec((block_rows, LANE), in_map),
            ],
            out_specs=pl.BlockSpec((1, 3, LANE), lambda c, s: (c, 0, 0)),
            scratch_shapes=[
                pltpu.VMEM((block_rows, LANE), jnp.float32),
                pltpu.VMEM((block_rows, LANE), jnp.float32),
                pltpu.VMEM((block_rows, LANE), jnp.float32),
            ],
        ),
        compiler_params=pltpu.CompilerParams(
            # Leading axis shards the reduction across TensorCores on multi-TC
            # chips (v7x); the reduction axis stays "arbitrary".
            dimension_semantics=("parallel", "arbitrary"),
        ),
    )(x2, y2)

    # Combine the per-split, per-lane partials and finish the Dice formula
    # (scalar cost) in plain JAX.
    sums = jnp.sum(partials, axis=(0, 2))                  # (3,)
    sum_x, sum_xy, sum_y = sums[0], sums[1], sums[2]
    w = 1.0 / (sum_y + epsilon) ** 2
    intersection = w * sum_xy
    union = w * (sum_x + sum_y)
    divided = 1.0 - 2.0 * (intersection + epsilon) / (union + epsilon)
    return divided  # scalar, so the reference's .mean() is the identity


def _reference(x, y, apply_non_lin=True, epsilon=1e-07):
    x = x.astype(jnp.float32)
    y = y.astype(jnp.float32)
    if apply_non_lin:
        x = jax.nn.sigmoid(x)
    w = 1.0 / (jnp.sum(y) + epsilon) ** 2
    intersection = w * jnp.sum(x * y)
    union = w * (jnp.sum(x) + jnp.sum(y))
    divided = 1.0 - 2.0 * (intersection + epsilon) / (union + epsilon)
    return jnp.mean(divided)


if __name__ == "__main__":
    key = jax.random.PRNGKey(0)
    kx, ky = jax.random.split(key)

    # NCHW: batch=2, channels=4, spatial=16x16 (module has no learnable params).
    x = jax.random.normal(kx, (2, 4, 16, 16), dtype=jnp.float32)
    y = (jax.random.uniform(ky, (2, 4, 16, 16)) > 0.5).astype(jnp.float32)

    loss = jax.block_until_ready(generalized_dice(x, y))
    ref = jax.block_until_ready(_reference(x, y))

    assert jnp.allclose(loss, ref, rtol=1e-5, atol=1e-6), (loss, ref)
    print("KERNEL_OK")
</pallas_src>

<mosaic_0001>
module attributes {stable_mosaic.version = 11 : i64} {
  func.func @_gdice_kernel(%arg0: i32, %arg1: i32, %arg2: memref<16x128xf32, #tpu.memory_space<vmem>>, %arg3: memref<16x128xf32, #tpu.memory_space<vmem>>, %arg4: memref<1x3x128xf32, #tpu.memory_space<vmem>>, %arg5: memref<16x128xf32, #tpu.memory_space<vmem>>, %arg6: memref<16x128xf32, #tpu.memory_space<vmem>>, %arg7: memref<16x128xf32, #tpu.memory_space<vmem>>) attributes {dimension_semantics = [#tpu.dimension_semantics<parallel>, #tpu.dimension_semantics<arbitrary>], iteration_bounds = array<i64: 1, 1>, scalar_prefetch = 0 : i64, scratch_operands = 3 : i64, tpu.core_type = #tpu.core_type<tc>, window_params = [{transform_indices = @transform_0, window_bounds = array<i64: 16, 128>}, {transform_indices = @transform_1, window_bounds = array<i64: 16, 128>}, {transform_indices = @transform_2, window_bounds = array<i64: 1, 3, 128>}]} {
    %c0_i32 = arith.constant 0 : i32
    %0 = arith.cmpi eq, %arg1, %c0_i32 : i32
    %1 = arith.extui %0 : i1 to i32
    %c0_i32_0 = arith.constant 0 : i32
    %2 = arith.cmpi ne, %1, %c0_i32_0 : i32
    scf.if %2 {
      %cst = arith.constant 0.000000e+00 : f32
      %16 = vector.broadcast %cst : f32 to vector<16x128xf32>
      %c0 = arith.constant 0 : index
      %c0_7 = arith.constant 0 : index
      %17 = vector.load %arg5[%c0, %c0_7] : memref<16x128xf32, #tpu.memory_space<vmem>>, vector<16x128xf32>
      tpu.vector_store %arg5[%c0, %c0_7], %16 {strides = array<i32>} : memref<16x128xf32, #tpu.memory_space<vmem>>, vector<16x128xf32>,
      %cst_8 = arith.constant 0.000000e+00 : f32
      %18 = vector.broadcast %cst_8 : f32 to vector<16x128xf32>
      %c0_9 = arith.constant 0 : index
      %c0_10 = arith.constant 0 : index
      %19 = vector.load %arg6[%c0_9, %c0_10] : memref<16x128xf32, #tpu.memory_space<vmem>>, vector<16x128xf32>
      tpu.vector_store %arg6[%c0_9, %c0_10], %18 {strides = array<i32>} : memref<16x128xf32, #tpu.memory_space<vmem>>, vector<16x128xf32>,
      %cst_11 = arith.constant 0.000000e+00 : f32
      %20 = vector.broadcast %cst_11 : f32 to vector<16x128xf32>
      %c0_12 = arith.constant 0 : index
      %c0_13 = arith.constant 0 : index
      %21 = vector.load %arg7[%c0_12, %c0_13] : memref<16x128xf32, #tpu.memory_space<vmem>>, vector<16x128xf32>
      tpu.vector_store %arg7[%c0_12, %c0_13], %20 {strides = array<i32>} : memref<16x128xf32, #tpu.memory_space<vmem>>, vector<16x128xf32>,
    } else {
    }
    %c1_i32 = arith.constant 1 : i32
    %3 = arith.muli %arg0, %c1_i32 : i32
    %4 = arith.addi %3, %arg1 : i32
    %c1_i32_1 = arith.constant 1 : i32
    %5 = arith.addi %4, %c1_i32_1 : i32
    %c2048_i32 = arith.constant 2048 : i32
    %6 = arith.muli %5, %c2048_i32 : i32
    %c2048_i32_2 = arith.constant 2048 : i32
    %7 = arith.cmpi sgt, %6, %c2048_i32_2 : i32
    %true = arith.constant true
    %8 = arith.xori %7, %true : i1
    %9 = arith.extui %8 : i1 to i32
    %c0_i32_3 = arith.constant 0 : i32
    %10 = arith.cmpi ne, %9, %c0_i32_3 : i32
    scf.if %10 {
      %c0 = arith.constant 0 : index
      %c0_7 = arith.constant 0 : index
      %16 = vector.load %arg2[%c0, %c0_7] : memref<16x128xf32, #tpu.memory_space<vmem>>, vector<16x128xf32>
      %c0_8 = arith.constant 0 : index
      %c0_9 = arith.constant 0 : index
      %17 = vector.load %arg3[%c0_8, %c0_9] : memref<16x128xf32, #tpu.memory_space<vmem>>, vector<16x128xf32>
      %18 = arith.negf %16 : vector<16x128xf32>
      %19 = math.exp %18 : vector<16x128xf32>
      %cst = arith.constant 1.000000e+00 : f32
      %20 = vector.broadcast %cst : f32 to vector<16x128xf32>
      %21 = arith.addf %20, %19 : vector<16x128xf32>
      %22 = arith.divf %20, %21 : vector<16x128xf32>
      %c0_10 = arith.constant 0 : index
      %c0_11 = arith.constant 0 : index
      %23 = vector.load %arg5[%c0_10, %c0_11] : memref<16x128xf32, #tpu.memory_space<vmem>>, vector<16x128xf32>
      %24 = arith.addf %23, %22 : vector<16x128xf32>
      %c0_12 = arith.constant 0 : index
      %c0_13 = arith.constant 0 : index
      %25 = vector.load %arg5[%c0_12, %c0_13] : memref<16x128xf32, #tpu.memory_space<vmem>>, vector<16x128xf32>
      tpu.vector_store %arg5[%c0_12, %c0_13], %24 {strides = array<i32>} : memref<16x128xf32, #tpu.memory_space<vmem>>, vector<16x128xf32>,
      %c0_14 = arith.constant 0 : index
      %c0_15 = arith.constant 0 : index
      %26 = vector.load %arg7[%c0_14, %c0_15] : memref<16x128xf32, #tpu.memory_space<vmem>>, vector<16x128xf32>
      %27 = arith.addf %26, %17 : vector<16x128xf32>
      %c0_16 = arith.constant 0 : index
      %c0_17 = arith.constant 0 : index
      %28 = vector.load %arg7[%c0_16, %c0_17] : memref<16x128xf32, #tpu.memory_space<vmem>>, vector<16x128xf32>
      tpu.vector_store %arg7[%c0_16, %c0_17], %27 {strides = array<i32>} : memref<16x128xf32, #tpu.memory_space<vmem>>, vector<16x128xf32>,
      %c0_18 = arith.constant 0 : index
      %c0_19 = arith.constant 0 : index
      %29 = vector.load %arg6[%c0_18, %c0_19] : memref<16x128xf32, #tpu.memory_space<vmem>>, vector<16x128xf32>
      %30 = arith.mulf %22, %17 : vector<16x128xf32>
      %31 = arith.addf %29, %30 : vector<16x128xf32>
      %c0_20 = arith.constant 0 : index
      %c0_21 = arith.constant 0 : index
      %32 = vector.load %arg6[%c0_20, %c0_21] : memref<16x128xf32, #tpu.memory_space<vmem>>, vector<16x128xf32>
      tpu.vector_store %arg6[%c0_20, %c0_21], %31 {strides = array<i32>} : memref<16x128xf32, #tpu.memory_space<vmem>>, vector<16x128xf32>,
    } else {
    }
    %11 = arith.extui %7 : i1 to i32
    %c0_i32_4 = arith.constant 0 : i32
    %12 = arith.cmpi ne, %11, %c0_i32_4 : i32
    scf.if %12 {
      %c2048_i32_7 = arith.constant 2048 : i32
      %16 = arith.muli %4, %c2048_i32_7 : i32
      %17 = tpu.iota {dimensions = array<i32: 0>} : vector<16x128xi32>
      %18 = tpu.iota {dimensions = array<i32: 1>} : vector<16x128xi32>
      %c128_i32 = arith.constant 128 : i32
      %19 = vector.broadcast %c128_i32 : i32 to vector<16x128xi32>
      %20 = arith.muli %17, %19 : vector<16x128xi32>
      %21 = vector.broadcast %16 : i32 to vector<16x128xi32>
      %22 = arith.addi %21, %20 : vector<16x128xi32>
      %23 = arith.addi %22, %18 : vector<16x128xi32>
      %c2048_i32_8 = arith.constant 2048 : i32
      %24 = vector.broadcast %c2048_i32_8 : i32 to vector<16x128xi32>
      %25 = arith.cmpi slt, %23, %24 : vector<16x128xi32>
      %c0 = arith.constant 0 : index
      %c0_9 = arith.constant 0 : index
      %26 = vector.load %arg2[%c0, %c0_9] : memref<16x128xf32, #tpu.memory_space<vmem>>, vector<16x128xf32>
      %c0_10 = arith.constant 0 : index
      %c0_11 = arith.constant 0 : index
      %27 = vector.load %arg3[%c0_10, %c0_11] : memref<16x128xf32, #tpu.memory_space<vmem>>, vector<16x128xf32>
      %28 = arith.negf %26 : vector<16x128xf32>
      %29 = math.exp %28 : vector<16x128xf32>
      %cst = arith.constant 1.000000e+00 : f32
      %30 = vector.broadcast %cst : f32 to vector<16x128xf32>
      %31 = arith.addf %30, %29 : vector<16x128xf32>
      %32 = arith.divf %30, %31 : vector<16x128xf32>
      %cst_12 = arith.constant 0.000000e+00 : f32
      %33 = vector.broadcast %cst_12 : f32 to vector<16x128xf32>
      %34 = arith.select %25, %32, %33 : vector<16x128xi1>, vector<16x128xf32>
      %cst_13 = arith.constant 0.000000e+00 : f32
      %35 = vector.broadcast %cst_13 : f32 to vector<16x128xf32>
      %36 = arith.select %25, %27, %35 : vector<16x128xi1>, vector<16x128xf32>
      %c0_14 = arith.constant 0 : index
      %c0_15 = arith.constant 0 : index
      %37 = vector.load %arg5[%c0_14, %c0_15] : memref<16x128xf32, #tpu.memory_space<vmem>>, vector<16x128xf32>
      %38 = arith.addf %37, %34 : vector<16x128xf32>
      %c0_16 = arith.constant 0 : index
      %c0_17 = arith.constant 0 : index
      %39 = vector.load %arg5[%c0_16, %c0_17] : memref<16x128xf32, #tpu.memory_space<vmem>>, vector<16x128xf32>
      tpu.vector_store %arg5[%c0_16, %c0_17], %38 {strides = array<i32>} : memref<16x128xf32, #tpu.memory_space<vmem>>, vector<16x128xf32>,
      %c0_18 = arith.constant 0 : index
      %c0_19 = arith.constant 0 : index
      %40 = vector.load %arg7[%c0_18, %c0_19] : memref<16x128xf32, #tpu.memory_space<vmem>>, vector<16x128xf32>
      %41 = arith.addf %40, %36 : vector<16x128xf32>
      %c0_20 = arith.constant 0 : index
      %c0_21 = arith.constant 0 : index
      %42 = vector.load %arg7[%c0_20, %c0_21] : memref<16x128xf32, #tpu.memory_space<vmem>>, vector<16x128xf32>
      tpu.vector_store %arg7[%c0_20, %c0_21], %41 {strides = array<i32>} : memref<16x128xf32, #tpu.memory_space<vmem>>, vector<16x128xf32>,
      %c0_22 = arith.constant 0 : index
      %c0_23 = arith.constant 0 : index
      %43 = vector.load %arg6[%c0_22, %c0_23] : memref<16x128xf32, #tpu.memory_space<vmem>>, vector<16x128xf32>
      %44 = arith.mulf %34, %36 : vector<16x128xf32>
      %45 = arith.addf %43, %44 : vector<16x128xf32>
      %c0_24 = arith.constant 0 : index
      %c0_25 = arith.constant 0 : index
      %46 = vector.load %arg6[%c0_24, %c0_25] : memref<16x128xf32, #tpu.memory_space<vmem>>, vector<16x128xf32>
      tpu.vector_store %arg6[%c0_24, %c0_25], %45 {strides = array<i32>} : memref<16x128xf32, #tpu.memory_space<vmem>>, vector<16x128xf32>,
    } else {
    }
    %c0_i32_5 = arith.constant 0 : i32
    %13 = arith.cmpi eq, %arg1, %c0_i32_5 : i32
    %14 = arith.extui %13 : i1 to i32
    %c0_i32_6 = arith.constant 0 : i32
    %15 = arith.cmpi ne, %14, %c0_i32_6 : i32
    scf.if %15 {
      %c0 = arith.constant 0 : index
      %c0_7 = arith.constant 0 : index
      %16 = vector.load %arg5[%c0, %c0_7] : memref<16x128xf32, #tpu.memory_space<vmem>>, vector<16x128xf32>
      %cst = arith.constant dense<0.000000e+00> : vector<128xf32>
      %17 = vector.multi_reduction <add>, %16, %cst [0] : vector<16x128xf32> to vector<128xf32>
      %c0_8 = arith.constant 0 : index
      %c0_9 = arith.constant 0 : index
      %c0_10 = arith.constant 0 : index
      %18 = vector.load %arg4[%c0_8, %c0_9, %c0_10] : memref<1x3x128xf32, #tpu.memory_space<vmem>>, vector<1x1x128xf32>
      %19 = vector.shape_cast %18 : vector<1x1x128xf32> to vector<128xf32>
      %20 = vector.shape_cast %17 : vector<128xf32> to vector<1x1x128xf32>
      tpu.vector_store %arg4[%c0_8, %c0_9, %c0_10], %20 {strides = array<i32>} : memref<1x3x128xf32, #tpu.memory_space<vmem>>, vector<1x1x128xf32>,
      %c0_11 = arith.constant 0 : index
      %c0_12 = arith.constant 0 : index
      %21 = vector.load %arg6[%c0_11, %c0_12] : memref<16x128xf32, #tpu.memory_space<vmem>>, vector<16x128xf32>
      %cst_13 = arith.constant dense<0.000000e+00> : vector<128xf32>
      %22 = vector.multi_reduction <add>, %21, %cst_13 [0] : vector<16x128xf32> to vector<128xf32>
      %c0_14 = arith.constant 0 : index
      %c1 = arith.constant 1 : index
      %c0_15 = arith.constant 0 : index
      %23 = vector.load %arg4[%c0_14, %c1, %c0_15] : memref<1x3x128xf32, #tpu.memory_space<vmem>>, vector<1x1x128xf32>
      %24 = vector.shape_cast %23 : vector<1x1x128xf32> to vector<128xf32>
      %25 = vector.shape_cast %22 : vector<128xf32> to vector<1x1x128xf32>
      tpu.vector_store %arg4[%c0_14, %c1, %c0_15], %25 {strides = array<i32>} : memref<1x3x128xf32, #tpu.memory_space<vmem>>, vector<1x1x128xf32>,
      %c0_16 = arith.constant 0 : index
      %c0_17 = arith.constant 0 : index
      %26 = vector.load %arg7[%c0_16, %c0_17] : memref<16x128xf32, #tpu.memory_space<vmem>>, vector<16x128xf32>
      %cst_18 = arith.constant dense<0.000000e+00> : vector<128xf32>
      %27 = vector.multi_reduction <add>, %26, %cst_18 [0] : vector<16x128xf32> to vector<128xf32>
      %c0_19 = arith.constant 0 : index
      %c2 = arith.constant 2 : index
      %c0_20 = arith.constant 0 : index
      %28 = vector.load %arg4[%c0_19, %c2, %c0_20] : memref<1x3x128xf32, #tpu.memory_space<vmem>>, vector<1x1x128xf32>
      %29 = vector.shape_cast %28 : vector<1x1x128xf32> to vector<128xf32>
      %30 = vector.shape_cast %27 : vector<128xf32> to vector<1x1x128xf32>
      tpu.vector_store %arg4[%c0_19, %c2, %c0_20], %30 {strides = array<i32>} : memref<1x3x128xf32, #tpu.memory_space<vmem>>, vector<1x1x128xf32>,
    } else {
    }
    return
  }
  func.func @transform_0(%arg0: i32, %arg1: i32) -> (i32, i32) {
    %c1_i32 = arith.constant 1 : i32
    %0 = arith.muli %arg0, %c1_i32 : i32
    %1 = arith.addi %0, %arg1 : i32
    %c0_i32 = arith.constant 0 : i32
    %2 = arith.minsi %1, %c0_i32 : i32
    %c0_i32_0 = arith.constant 0 : i32
    %c0_i32_1 = arith.constant 0 : i32
    return %2, %c0_i32_0 : i32, i32
  }
  func.func @transform_1(%arg0: i32, %arg1: i32) -> (i32, i32) {
    %c1_i32 = arith.constant 1 : i32
    %0 = arith.muli %arg0, %c1_i32 : i32
    %1 = arith.addi %0, %arg1 : i32
    %c0_i32 = arith.constant 0 : i32
    %2 = arith.minsi %1, %c0_i32 : i32
    %c0_i32_0 = arith.constant 0 : i32
    %c0_i32_1 = arith.constant 0 : i32
    return %2, %c0_i32_0 : i32, i32
  }
  func.func @transform_2(%arg0: i32, %arg1: i32) -> (i32, i32, i32) {
    %c0_i32 = arith.constant 0 : i32
    %c0_i32_0 = arith.constant 0 : i32
    %c0_i32_1 = arith.constant 0 : i32
    return %arg0, %c0_i32, %c0_i32_0 : i32, i32, i32
  }
}

</mosaic_0001>

<llo_original>
// kernel: tpu_custom_call.1
$region0: #{tpu_custom_call.1}
  #allocation0 [shape = 'u32[]', space=smem, size = 0x4, offset = 0x4, fixed_abs, tag = 'smem constant byte address 0x4 - core index']
  #allocation1 [shape = 'u32[144,128]{1,0:T(1,128)}', space=vmem, size = 0x12000, scoped, tag = 'internal scratch']
  #allocation2 [shape = 'f32[16,128]{1,0:T(8,128)}', space=vmem, size = 0x2000, scoped, tag = 'scratch operand']
  #allocation3 [shape = 'f32[16,128]{1,0:T(8,128)}', space=vmem, size = 0x2000, scoped, tag = 'scratch operand']
  #allocation4 [shape = 'f32[16,128]{1,0:T(8,128)}', space=vmem, size = 0x2000, scoped, tag = 'scratch operand']
  %s0 = inlined_call_operand.hbm [shape: f32[16,128], index: 0, kind: input, shape index: {}]
  %s1 = inlined_call_operand.hbm [shape: f32[16,128], index: 1, kind: input, shape index: {}]
  %s2 = inlined_call_operand.vmem [shape: f32[1,3,128], index: 2, kind: output, shape index: {}]
  %s3 = sld [smem:[#allocation0]]
  $region42: #{tpu_custom_call.1} parent=0
    _
  %s5 = ssub.s32 1, %s3
  %s6 = scalar_select 0, %s5, %s3
  $region1: #{tpu_custom_call.1} parent=0
    #allocation5 [shape = 'u8[8192]{0}', space=vmem, size = 0x2000, scoped, tag = 'input window, operand 0, single buffered']
    #allocation6 [shape = 's32[1]{0}', space=sflag, size = 0x4, scoped, tag = 'scoped memory for tpu_custom_call.1']
    #allocation7 [shape = 'u8[8192]{0}', space=vmem, size = 0x2000, scoped, tag = 'input window, operand 1, single buffered']
    #allocation8 [shape = 's32[1]{0}', space=sflag, size = 0x4, scoped, tag = 'scoped memory for tpu_custom_call.1']
    %7 = vsyncpa [#allocation6], 0
    %8 = vsyncpa [#allocation8], 0
    // Predicated region
    $region2: #{tpu_custom_call.1} parent=1 // pred_check
      _
    $region3: #{tpu_custom_call.1} parent=1 // pred_check_branch
      %10 = sbr.rel (0) target = $region5
    $region4: #{tpu_custom_call.1} parent=1 // pred_region
      %s11 = sadd.s32 0, 0
      %p12 = scmp.lt.s32.totalorder %s11, 0
      %s13 = scalar_select %p12, %s11, 0
      %s14 = smul.u32 2, %s13
      %s16 = ssub.s32 256, 256
      %17 = vsyncadd [#allocation6], %s16
      %s18 = smul.addr %s14, 128
      %s19 = scalar_lea.hbm %s0, %s18
      %s20 = sshll.u32 [#allocation5], 4
      %s21 = int_to_ptr.vmem [resolvable:$true] %s20
      %26 = dma.hbm_to_vmem [thread:$0]  %s19, 256, %s21, [#allocation6], 128, 128, 8
    $region5: #{tpu_custom_call.1} parent=1 // pred_fallthru
      _
    // Predicated region
    $region6: #{tpu_custom_call.1} parent=1 // pred_check
      _
    $region7: #{tpu_custom_call.1} parent=1 // pred_check_branch
      %28 = sbr.rel (0) target = $region9
    $region8: #{tpu_custom_call.1} parent=1 // pred_region
      %s29 = sadd.s32 0, 0
      %p30 = scmp.lt.s32.totalorder %s29, 0
      %s31 = scalar_select %p30, %s29, 0
      %s32 = smul.u32 2, %s31
      %s34 = ssub.s32 256, 256
      %35 = vsyncadd [#allocation8], %s34
      %s36 = smul.addr %s32, 128
      %s37 = scalar_lea.hbm %s1, %s36
      %s38 = sshll.u32 [#allocation7], 4
      %s39 = int_to_ptr.vmem [resolvable:$true] %s38
      %44 = dma.hbm_to_vmem [thread:$0]  %s37, 256, %s39, [#allocation8], 128, 128, 8
    $region9: #{tpu_custom_call.1} parent=1 // pred_fallthru
      _
    // Predicated region
    $region10: #{tpu_custom_call.1} parent=1 // pred_check
      _
    $region11: #{tpu_custom_call.1} parent=1 // pred_check_branch
      %46 = sbr.rel (0) target = $region13
    $region12: #{tpu_custom_call.1} parent=1 // pred_region
      %47 = dma.done [#allocation6], 256
    $region13: #{tpu_custom_call.1} parent=1 // pred_fallthru
      _
    // Predicated region
    $region14: #{tpu_custom_call.1} parent=1 // pred_check
      _
    $region15: #{tpu_custom_call.1} parent=1 // pred_check_branch
      %49 = sbr.rel (0) target = $region17
    $region16: #{tpu_custom_call.1} parent=1 // pred_region
      %50 = dma.done [#allocation8], 256
    $region17: #{tpu_custom_call.1} parent=1 // pred_fallthru
      _
    %s51 = sadd.s32 0, 0
    %p52 = scmp.lt.s32.totalorder %s51, 0
    %s53 = scalar_select %p52, %s51, 0
    %s54 = smul.u32 2, %s53
    %s55 = sadd.s32 0, 0
    %p56 = scmp.lt.s32.totalorder %s55, 0
    %s57 = scalar_select %p56, %s55, 0
    %s58 = smul.u32 2, %s57
    %p59 = scmp.eq.s32.totalorder 0, 0
    // Predicated region
    $region18: #{tpu_custom_call.1} parent=1 // pred_check
      %p60 = pneg %p59
    $region19: #{tpu_custom_call.1} parent=1 // pred_check_branch
      %62 = sbr.rel (%p60) target = $region21
    $region20: #{tpu_custom_call.1} parent=1 // pred_region
      %63 = vst [vmem:[#allocation2] sm:$0xff] 0.0
      %64 = vst [vmem:[#allocation2 + $0x8] sm:$0xff] 0.0
      %65 = vst [vmem:[#allocation3] sm:$0xff] 0.0
      %66 = vst [vmem:[#allocation3 + $0x8] sm:$0xff] 0.0
      %67 = vst [vmem:[#allocation4] sm:$0xff] 0.0
      %68 = vst [vmem:[#allocation4 + $0x8] sm:$0xff] 0.0
    $region21: #{tpu_custom_call.1} parent=1 // pred_fallthru
      _
    %s69 = sadd.s32 0, 0
    %s70 = sadd.s32 %s69, 1
    %s71 = smul.u32 %s70, 2048
    %p72 = scmp.gt.s32.totalorder %s71, 2048
    %p73 = scmp.le.s32.totalorder %s71, 2048
    // Predicated region
    $region22: #{tpu_custom_call.1} parent=1 // pred_check
      %p74 = pneg %p73
    $region23: #{tpu_custom_call.1} parent=1 // pred_check_branch
      %76 = sbr.rel (%p74) target = $region25
    $region24: #{tpu_custom_call.1} parent=1 // pred_region
      %v77 = vld [vmem:[#allocation5] sm:$0xff]
      %v78 = vld [vmem:[#allocation5 + $0x8] sm:$0xff]
      %v79 = vld [vmem:[#allocation7] sm:$0xff]
      %v80 = vld [vmem:[#allocation7 + $0x8] sm:$0xff]
      %v81 = vxor.u32 %v77, 2147483648
      %v82 = vxor.u32 %v78, 2147483648
      %v83 = vmul.f32 %v81, 1.442695
      %v84 = vpow.pop %v83
      %v85 = vmul.f32 %v82, 1.442695
      %v86 = vpow.pop %v85
      %v87 = vadd.f32 %v84, 1.0
      %v88 = vadd.f32 %v86, 1.0
      %v89 = vrcp.pop %v87
      %v90 = vmul.f32 1.0, %v89
      %v91 = vrcp.pop %v88
      %v92 = vmul.f32 1.0, %v91
      %v93 = vld [vmem:[#allocation2] sm:$0xff]
      %v94 = vld [vmem:[#allocation2 + $0x8] sm:$0xff]
      %v95 = vadd.f32 %v93, %v90
      %v96 = vadd.f32 %v94, %v92
      %97 = vst [vmem:[#allocation2] sm:$0xff] %v95
      %98 = vst [vmem:[#allocation2 + $0x8] sm:$0xff] %v96
      %v99 = vld [vmem:[#allocation4] sm:$0xff]
      %v100 = vld [vmem:[#allocation4 + $0x8] sm:$0xff]
      %v101 = vadd.f32 %v99, %v79
      %v102 = vadd.f32 %v100, %v80
      %103 = vst [vmem:[#allocation4] sm:$0xff] %v101
      %104 = vst [vmem:[#allocation4 + $0x8] sm:$0xff] %v102
      %v105 = vld [vmem:[#allocation3] sm:$0xff]
      %v106 = vld [vmem:[#allocation3 + $0x8] sm:$0xff]
      %v107 = vmul.f32 %v90, %v79
      %v108 = vmul.f32 %v92, %v80
      %v109 = vadd.f32 %v105, %v107
      %v110 = vadd.f32 %v106, %v108
      %111 = vst [vmem:[#allocation3] sm:$0xff] %v109
      %112 = vst [vmem:[#allocation3 + $0x8] sm:$0xff] %v110
    $region25: #{tpu_custom_call.1} parent=1 // pred_fallthru
      _
    // Predicated region
    $region26: #{tpu_custom_call.1} parent=1 // pred_check
      %p113 = pneg %p72
    $region27: #{tpu_custom_call.1} parent=1 // pred_check_branch
      %115 = sbr.rel (%p113) target = $region29
    $region28: #{tpu_custom_call.1} parent=1 // pred_region
      %s116 = smul.u32 %s69, 2048
      %v117 = vlaneseq
      %v118 = vshrl.u32 %v117, 7
      %v119 = vadd.s32 %v118, 8
      %v120 = vlaneseq
      %v121 = vand.u32 %v120, 127
      %v122 = vmul.u32 %v118, 128
      %v123 = vmul.u32 %v119, 128
      %v124 = vstv %s116
      %v125 = vadd.s32 %v124, %v122
      %v126 = vadd.s32 %v124, %v123
      %v127 = vadd.s32 %v125, %v121
      %v128 = vadd.s32 %v126, %v121
      %vm129 = vcmp.lt.s32.totalorder %v127, 2048
      %vm130 = vcmp.lt.s32.totalorder %v128, 2048
      %v131 = vld [vmem:[#allocation5] sm:$0xff]
      %v132 = vld [vmem:[#allocation5 + $0x8] sm:$0xff]
      %v133 = vld [vmem:[#allocation7] sm:$0xff]
      %v134 = vld [vmem:[#allocation7 + $0x8] sm:$0xff]
      %v135 = vxor.u32 %v131, 2147483648
      %v136 = vxor.u32 %v132, 2147483648
      %v137 = vmul.f32 %v135, 1.442695
      %v138 = vpow.pop %v137
      %v139 = vmul.f32 %v136, 1.442695
      %v140 = vpow.pop %v139
      %v141 = vadd.f32 %v138, 1.0
      %v142 = vadd.f32 %v140, 1.0
      %v143 = vrcp.pop %v141
      %v144 = vmul.f32 1.0, %v143
      %v145 = vrcp.pop %v142
      %v146 = vmul.f32 1.0, %v145
      %v147 = vsel %vm129, %v144, 0.0
      %v148 = vsel %vm130, %v146, 0.0
      %v149 = vsel %vm129, %v133, 0.0
      %v150 = vsel %vm130, %v134, 0.0
      %v151 = vld [vmem:[#allocation2] sm:$0xff]
      %v152 = vld [vmem:[#allocation2 + $0x8] sm:$0xff]
      %v153 = vadd.f32 %v151, %v147
      %v154 = vadd.f32 %v152, %v148
      %155 = vst [vmem:[#allocation2] sm:$0xff] %v153
      %156 = vst [vmem:[#allocation2 + $0x8] sm:$0xff] %v154
      %v157 = vld [vmem:[#allocation4] sm:$0xff]
      %v158 = vld [vmem:[#allocation4 + $0x8] sm:$0xff]
      %v159 = vadd.f32 %v157, %v149
      %v160 = vadd.f32 %v158, %v150
      %161 = vst [vmem:[#allocation4] sm:$0xff] %v159
      %162 = vst [vmem:[#allocation4 + $0x8] sm:$0xff] %v160
      %v163 = vld [vmem:[#allocation3] sm:$0xff]
      %v164 = vld [vmem:[#allocation3 + $0x8] sm:$0xff]
      %v165 = vmul.f32 %v147, %v149
      %v166 = vmul.f32 %v148, %v150
      %v167 = vadd.f32 %v163, %v165
      %v168 = vadd.f32 %v164, %v166
      %169 = vst [vmem:[#allocation3] sm:$0xff] %v167
      %170 = vst [vmem:[#allocation3 + $0x8] sm:$0xff] %v168
    $region29: #{tpu_custom_call.1} parent=1 // pred_fallthru
      _
    // Predicated region
    $region30: #{tpu_custom_call.1} parent=1 // pred_check
      %p171 = pneg %p59
    $region31: #{tpu_custom_call.1} parent=1 // pred_check_branch
      %173 = sbr.rel (%p171) target = $region33
    $region32: #{tpu_custom_call.1} parent=1 // pred_region
      %v174 = vld [vmem:[#allocation2] sm:$0xff]
      %v175 = vld [vmem:[#allocation2 + $0x8] sm:$0xff]
      %v176 = vadd.f32 %v174, %v175
      %v177 = vrot.slane %v176, 4
      %v178 = vadd.f32 %v176, %v177
      %v179 = vrot.slane %v178, 2
      %v180 = vadd.f32 %v178, %v179
      %v181 = vrot.slane %v180, 1
      %v182 = vadd.f32 %v180, %v181
      %183 = vst [vmem:[%s2] sm:$0x1] %v182
      %v184 = vld [vmem:[#allocation3] sm:$0xff]
      %v185 = vld [vmem:[#allocation3 + $0x8] sm:$0xff]
      %v186 = vadd.f32 %v184, %v185
      %v187 = vrot.slane %v186, 4
      %v188 = vadd.f32 %v186, %v187
      %v189 = vrot.slane %v188, 2
      %v190 = vadd.f32 %v188, %v189
      %v191 = vrot.slane %v190, 1
      %v192 = vadd.f32 %v190, %v191
      %193 = vst [vmem:[%s2 + $0x1] sm:$0x1] %v192
      %v194 = vld [vmem:[#allocation4] sm:$0xff]
      %v195 = vld [vmem:[#allocation4 + $0x8] sm:$0xff]
      %v196 = vadd.f32 %v194, %v195
      %v197 = vrot.slane %v196, 4
      %v198 = vadd.f32 %v196, %v197
      %v199 = vrot.slane %v198, 2
      %v200 = vadd.f32 %v198, %v199
      %v201 = vrot.slane %v200, 1
      %v202 = vadd.f32 %v200, %v201
      %203 = vst [vmem:[%s2 + $0x2] sm:$0x1] %v202
    $region33: #{tpu_custom_call.1} parent=1 // pred_fallthru
      _
    // Predicated region
    $region34: #{tpu_custom_call.1} parent=1 // pred_check
      _
    $region35: #{tpu_custom_call.1} parent=1 // pred_check_branch
      %205 = sbr.rel (0) target = $region37
    $region36: #{tpu_custom_call.1} parent=1 // pred_region
      _
    $region37: #{tpu_custom_call.1} parent=1 // pred_fallthru
      _
    // Predicated region
    $region38: #{tpu_custom_call.1} parent=1 // pred_check
      _
    $region39: #{tpu_custom_call.1} parent=1 // pred_check_branch
      %207 = sbr.rel (0) target = $region41
    $region40: #{tpu_custom_call.1} parent=1 // pred_region
      _
    $region41: #{tpu_custom_call.1} parent=1 // pred_fallthru
      _
    %208 = vsyncpa [#allocation6], 1
    %209 = vsyncpa [#allocation8], 1

</llo_original>
